<compile_context>
chip_gen: v5e
topology: v5e:2x2
jax: 0.10.0
libtpu: 0.0.40
codegen_flags: <defaults>
</compile_context>

<pallas_src>
import numpy as np
import jax
import jax.numpy as jnp
from jax.experimental import pallas as pl
from jax.experimental.pallas import tpu as pltpu


_PALLAS_MIN_ROWS = 2048      # below this a fused XLA scatter-add beats launch overhead
_PALLAS_MAX_SEGMENTS = 512   # above this the one-hot compare is no longer worth it


def _cdiv(a, b):
    return (a + b - 1) // b


def _round_up(x, m):
    return _cdiv(x, m) * m


def _default_n_splits():
    """2-way core-parallel split only on multi-TensorCore chips (v7x); 1 elsewhere."""
    try:
        kind = jax.devices()[0].device_kind.lower()
    except Exception:
        return 1
    if "v7" in kind or "7x" in kind:
        return 2
    return 1


def _make_segment_sum_kernel(*, tn, ck, n_chunks, d_sub, n_rows, bps):
    """Segment-sum kernel over lane-dense (1, tn) blocks of values / indices."""

    def kernel(idx_ref, vals_ref, out_ref):
        k = pl.program_id(1)                      # reduction over atom blocks (last axis)

        @pl.when(k == 0)
        def _():
            out_ref[...] = jnp.zeros_like(out_ref)

        # Unclamped logical block id -> global lane offset of this block.
        # Lanes >= n_rows (ragged last block / clamped overflow blocks of the
        # core split) are masked: src -> 0 AND index -> -1 (never matches a
        # segment), so stale/NaN block padding cannot reach the accumulator.
        block_start = (pl.program_id(0) * bps + k) * tn

        seg = jax.lax.broadcasted_iota(jnp.int32, (d_sub, ck), 0)   # segment id / sublane
        lane = jax.lax.broadcasted_iota(jnp.int32, (1, ck), 1)      # lane offset in chunk

        def chunk(j, acc):
            off = pl.multiple_of(j * ck, 128)
            valid = (block_start + off + lane) < n_rows                       # (1, ck)
            idx_c = jnp.where(valid, idx_ref[:, pl.ds(off, ck)], -1)          # (1, ck)
            src_c = jnp.where(valid,
                              vals_ref[:, pl.ds(off, ck)].astype(jnp.float32),
                              0.0)                                            # (1, ck)
            hit = idx_c == seg                                                # (d_sub, ck)
            return acc + jnp.where(hit, src_c, 0.0)                           # VPU only

        acc = jax.lax.fori_loop(0, n_chunks, chunk,
                                jnp.zeros((d_sub, ck), jnp.float32),
                                unroll=n_chunks <= 8)
        out_ref[...] += acc

    return kernel


def _segment_sum_1d_pallas(vals, idx, dim_size, *, n_splits=None, target_lanes=8192):
    """Segment-sum of 1-D `vals` (N,) by 1-D `idx` into (dim_size,) using Pallas."""
    N = int(vals.shape[0])
    if N == 0:
        return jnp.zeros((dim_size,), vals.dtype)

    d_sub = max(8, _round_up(int(dim_size), 8))          # segments live on sublanes
    # Chunk width: keep the (d_sub, ck) masked temporary within ~8 vregs (32 KiB f32).
    ck = (32 * 1024) // (4 * d_sub)
    ck = max(128, min(1024, (ck // 128) * 128))
    n_chunks = max(1, min(max(1, target_lanes // ck), _cdiv(N, ck)))
    tn = ck * n_chunks                                    # lanes per grid step

    nb = _cdiv(N, tn)                                     # real atom blocks
    if n_splits is None:
        n_splits = _default_n_splits()
    n_splits = max(1, min(int(n_splits), nb))             # balanced core split
    bps = _cdiv(nb, n_splits)                             # blocks per split

    # TODO(synk): indices >= 2**31 (true torch.long range) are not supported.
    idx2d = idx.astype(jnp.int32).reshape(1, N)           # lane-dense index stream
    vals2d = vals.reshape(1, N)                           # lane-dense value stream

    def in_map(s, k):
        # Overflow (clamped) blocks re-read the last real block; their
        # contribution is masked to zero inside the kernel.
        return (0, jnp.minimum(s * bps + k, nb - 1))

    kernel = _make_segment_sum_kernel(tn=tn, ck=ck, n_chunks=n_chunks,
                                      d_sub=d_sub, n_rows=N, bps=bps)

    partials = pl.pallas_call(
        kernel,
        out_shape=jax.ShapeDtypeStruct((n_splits, d_sub, ck), jnp.float32),
        grid=(n_splits, bps),
        in_specs=[
            pl.BlockSpec((1, tn), in_map),                # index block (lane-dense)
            pl.BlockSpec((1, tn), in_map),                # value block (lane-dense)
        ],
        out_specs=pl.BlockSpec((None, d_sub, ck), lambda s, k: (s, 0, 0)),
        compiler_params=pltpu.CompilerParams(
            dimension_semantics=("parallel", "arbitrary")),
    )(idx2d, vals2d)

    # Epilogue (fuses into a single XLA reduce): sum split & lane partials,
    # drop segment padding, restore dtype.
    return partials.sum(axis=(0, 2))[:dim_size].astype(vals.dtype)


def _segment_sum_1d(vals, idx, dim_size, *, n_splits=None, target_lanes=8192):
    """Dispatcher: tiny inputs / huge dim_size use one fused XLA scatter-add."""
    N = int(vals.shape[0])
    if N == 0:
        return jnp.zeros((dim_size,), vals.dtype)
    if N < _PALLAS_MIN_ROWS or dim_size > _PALLAS_MAX_SEGMENTS:
        out = jnp.zeros((dim_size,), jnp.float32).at[idx].add(vals.astype(jnp.float32))
        return out.astype(vals.dtype)
    return _segment_sum_1d_pallas(vals, idx, dim_size,
                                  n_splits=n_splits, target_lanes=target_lanes)


def kimapi_sum_index(src, index, *, training=True, dim_size=None):
    """JAX/Pallas equivalent of KIMAPISumIndex.forward.

    Pass `dim_size` explicitly in hot paths: the PyTorch module derives it from
    index.max() at runtime, which here forces a device->host sync per distinct
    value (data-dependent output shape).
    """
    if not jnp.issubdtype(index.dtype, jnp.integer):
        raise RuntimeError("index must have an integer dtype (torch.long analogue)")
    if index.ndim != 1:
        # TODO(synk): index with ndim > 1 (per-element scatter targets) not supported.
        raise NotImplementedError("only 1-D index is supported")
    if src.shape[0] != index.shape[0]:
        raise ValueError("src and index must agree along dim 0")

    N = int(index.shape[0])
    if dim_size is None:
        if N == 0:
            raise ValueError("dim_size must be given for empty inputs")
        dim_size = int(jax.device_get(jnp.max(index))) + 1
    dim_size = int(dim_size)

    idx = index.astype(jnp.int32)

    if src.ndim == 1:
        reduced = _segment_sum_1d(src, idx, dim_size)
    elif src.ndim == 2:
        # PyTorch unsqueezes (does NOT expand) the 1-D index, so scatter_add_
        # only touches column 0 of the output; remaining columns stay zero.
        col0 = _segment_sum_1d(src[:, 0], idx, dim_size)
        reduced = jnp.zeros((dim_size,) + src.shape[1:], src.dtype).at[:, 0].set(col0)
    else:
        # TODO(synk): src with ndim > 2 not supported in this synthetic kernel.
        raise NotImplementedError("only 1-D / 2-D src supported")

    return reduced if training else reduced[0]


if __name__ == "__main__":
    key = jax.random.PRNGKey(0)
    k1, k2, k3, k4, k5, k6 = jax.random.split(key, 6)

    # --- 1) Small KIM-API-like case: per-atom quantities (N, F), batch index.
    #        Exercises the fused-XLA small-N fallback and the column-0-only
    #        scatter_add_ semantics for 2-D src.
    N, F, n_batch = 16, 3, 4
    src = jax.random.normal(k1, (N, F), dtype=jnp.float32)
    index = jax.random.randint(k2, (N,), 0, n_batch, dtype=jnp.int32)
    index = index.at[-1].set(n_batch - 1)     # guarantee dim_size == n_batch

    out_tr = jax.block_until_ready(
        kimapi_sum_index(src, index, training=True, dim_size=n_batch))
    out_ev = jax.block_until_ready(
        kimapi_sum_index(src, index, training=False, dim_size=n_batch))

    ref = jnp.zeros((n_batch, F), jnp.float32).at[index, 0].add(src[:, 0])
    np.testing.assert_allclose(np.asarray(out_tr), np.asarray(ref), rtol=1e-6, atol=1e-6)
    np.testing.assert_allclose(np.asarray(out_ev), np.asarray(ref[0]), rtol=1e-6, atol=1e-6)
    assert out_tr.shape == (n_batch, F) and out_ev.shape == (F,)

    # --- 2) Larger 1-D case through the Pallas kernel via the module wrapper
    #        (ragged last block, multi-block reduction, auto n_splits).
    N2, n_batch2 = 3 * 8192 + 517, 5
    src2 = jax.random.normal(k3, (N2,), dtype=jnp.float32)
    idx2 = jax.random.randint(k4, (N2,), 0, n_batch2, dtype=jnp.int32)
    idx2 = idx2.at[0].set(n_batch2 - 1)

    out2_tr = jax.block_until_ready(kimapi_sum_index(src2, idx2, training=True))
    out2_ev = jax.block_until_ready(
        kimapi_sum_index(src2, idx2, training=False, dim_size=n_batch2))

    ref2 = jnp.zeros((n_batch2,), jnp.float32).at[idx2].add(src2)
    np.testing.assert_allclose(np.asarray(out2_tr), np.asarray(ref2), rtol=1e-4, atol=1e-2)
    np.testing.assert_allclose(np.asarray(out2_ev), np.asarray(ref2[0]), rtol=1e-4, atol=1e-2)
    assert out2_tr.shape == (n_batch2,)

    # --- 3) Direct Pallas path with small blocks and a forced 2-way split:
    #        exercises clamped overflow blocks, in-kernel masking and the
    #        cross-split reduce on any TPU generation.
    N3, n_batch3 = 5 * 1024 - 37, 7
    src3 = jax.random.normal(k5, (N3,), dtype=jnp.float32)
    idx3 = jax.random.randint(k6, (N3,), 0, n_batch3, dtype=jnp.int32)
    idx3 = idx3.at[0].set(n_batch3 - 1)

    out3 = jax.block_until_ready(
        _segment_sum_1d_pallas(src3, idx3, n_batch3, n_splits=2, target_lanes=1024))
    ref3 = jnp.zeros((n_batch3,), jnp.float32).at[idx3].add(src3)
    np.testing.assert_allclose(np.asarray(out3), np.asarray(ref3), rtol=1e-4, atol=1e-3)

    print("KERNEL_OK")
</pallas_src>

<mosaic_0001>
module attributes {stable_mosaic.version = 11 : i64} {
  func.func @kernel(%arg0: i32, %arg1: i32, %arg2: memref<1x8192xi32, #tpu.memory_space<vmem>>, %arg3: memref<1x8192xf32, #tpu.memory_space<vmem>>, %arg4: memref<1x8x1024xf32, #tpu.memory_space<vmem>>) attributes {dimension_semantics = [#tpu.dimension_semantics<parallel>, #tpu.dimension_semantics<arbitrary>], iteration_bounds = array<i64: 1, 4>, scalar_prefetch = 0 : i64, scratch_operands = 0 : i64, tpu.core_type = #tpu.core_type<tc>, window_params = [{transform_indices = @transform_0, window_bounds = array<i64: 1, 8192>}, {transform_indices = @transform_1, window_bounds = array<i64: 1, 8192>}, {transform_indices = @transform_2, window_bounds = array<i64: 1, 8, 1024>}]} {
    %c0_i32 = arith.constant 0 : i32
    %0 = arith.cmpi eq, %arg1, %c0_i32 : i32
    %1 = arith.extui %0 : i1 to i32
    %c0_i32_0 = arith.constant 0 : i32
    %2 = arith.cmpi ne, %1, %c0_i32_0 : i32
    scf.if %2 {
      %cst_61 = arith.constant 0.000000e+00 : f32
      %191 = vector.broadcast %cst_61 : f32 to vector<8x1024xf32>
      %c0_62 = arith.constant 0 : index
      %c0_63 = arith.constant 0 : index
      %c0_64 = arith.constant 0 : index
      %192 = vector.load %arg4[%c0_62, %c0_63, %c0_64] : memref<1x8x1024xf32, #tpu.memory_space<vmem>>, vector<1x8x1024xf32>
      %193 = vector.shape_cast %192 : vector<1x8x1024xf32> to vector<8x1024xf32>
      %194 = vector.shape_cast %191 : vector<8x1024xf32> to vector<1x8x1024xf32>
      tpu.vector_store %arg4[%c0_62, %c0_63, %c0_64], %194 {strides = array<i32>} : memref<1x8x1024xf32, #tpu.memory_space<vmem>>, vector<1x8x1024xf32>,
    } else {
    }
    %c4_i32 = arith.constant 4 : i32
    %3 = arith.muli %arg0, %c4_i32 : i32
    %4 = arith.addi %3, %arg1 : i32
    %c8192_i32 = arith.constant 8192 : i32
    %5 = arith.muli %4, %c8192_i32 : i32
    %6 = tpu.iota {dimensions = array<i32: 0>} : vector<8x1024xi32>
    %7 = tpu.iota {dimensions = array<i32: 1>} : vector<1x1024xi32>
    %cst = arith.constant 0.000000e+00 : f32
    %8 = vector.broadcast %cst : f32 to vector<8x1024xf32>
    %c0_i32_1 = arith.constant 0 : i32
    %c1024_i32 = arith.constant 1024 : i32
    %9 = arith.muli %c0_i32_1, %c1024_i32 : i32
    %10 = tpu.assume_multiple %9, 128 : i32
    %11 = arith.addi %5, %10 : i32
    %12 = vector.broadcast %11 : i32 to vector<1x1024xi32>
    %13 = arith.addi %12, %7 : vector<1x1024xi32>
    %c25093_i32 = arith.constant 25093 : i32
    %14 = vector.broadcast %c25093_i32 : i32 to vector<1x1024xi32>
    %15 = arith.cmpi slt, %13, %14 : vector<1x1024xi32>
    %c0 = arith.constant 0 : index
    %16 = arith.index_cast %10 : i32 to index
    %17 = vector.load %arg2[%c0, %16] : memref<1x8192xi32, #tpu.memory_space<vmem>>, vector<1x1024xi32>
    %c-1_i32 = arith.constant -1 : i32
    %18 = vector.broadcast %c-1_i32 : i32 to vector<1x1024xi32>
    %19 = arith.select %15, %17, %18 : vector<1x1024xi1>, vector<1x1024xi32>
    %c0_2 = arith.constant 0 : index
    %20 = arith.index_cast %10 : i32 to index
    %21 = vector.load %arg3[%c0_2, %20] : memref<1x8192xf32, #tpu.memory_space<vmem>>, vector<1x1024xf32>
    %cst_3 = arith.constant 0.000000e+00 : f32
    %22 = vector.broadcast %cst_3 : f32 to vector<1x1024xf32>
    %23 = arith.select %15, %21, %22 : vector<1x1024xi1>, vector<1x1024xf32>
    %24 = vector.broadcast %19 : vector<1x1024xi32> to vector<8x1024xi32>
    %25 = arith.cmpi eq, %24, %6 : vector<8x1024xi32>
    %cst_4 = arith.constant 0.000000e+00 : f32
    %26 = vector.shape_cast %23 : vector<1x1024xf32> to vector<1x1024xf32>
    %27 = vector.broadcast %26 : vector<1x1024xf32> to vector<8x1024xf32>
    %28 = vector.broadcast %cst_4 : f32 to vector<8x1024xf32>
    %29 = arith.select %25, %27, %28 : vector<8x1024xi1>, vector<8x1024xf32>
    %30 = arith.addf %8, %29 : vector<8x1024xf32>
    %c1_i32 = arith.constant 1 : i32
    %c1024_i32_5 = arith.constant 1024 : i32
    %31 = arith.muli %c1_i32, %c1024_i32_5 : i32
    %32 = tpu.assume_multiple %31, 128 : i32
    %33 = arith.addi %5, %32 : i32
    %34 = vector.broadcast %33 : i32 to vector<1x1024xi32>
    %35 = arith.addi %34, %7 : vector<1x1024xi32>
    %c25093_i32_6 = arith.constant 25093 : i32
    %36 = vector.broadcast %c25093_i32_6 : i32 to vector<1x1024xi32>
    %37 = arith.cmpi slt, %35, %36 : vector<1x1024xi32>
    %c0_7 = arith.constant 0 : index
    %38 = arith.index_cast %32 : i32 to index
    %39 = vector.load %arg2[%c0_7, %38] : memref<1x8192xi32, #tpu.memory_space<vmem>>, vector<1x1024xi32>
    %c-1_i32_8 = arith.constant -1 : i32
    %40 = vector.broadcast %c-1_i32_8 : i32 to vector<1x1024xi32>
    %41 = arith.select %37, %39, %40 : vector<1x1024xi1>, vector<1x1024xi32>
    %c0_9 = arith.constant 0 : index
    %42 = arith.index_cast %32 : i32 to index
    %43 = vector.load %arg3[%c0_9, %42] : memref<1x8192xf32, #tpu.memory_space<vmem>>, vector<1x1024xf32>
    %cst_10 = arith.constant 0.000000e+00 : f32
    %44 = vector.broadcast %cst_10 : f32 to vector<1x1024xf32>
    %45 = arith.select %37, %43, %44 : vector<1x1024xi1>, vector<1x1024xf32>
    %46 = vector.broadcast %41 : vector<1x1024xi32> to vector<8x1024xi32>
    %47 = arith.cmpi eq, %46, %6 : vector<8x1024xi32>
    %cst_11 = arith.constant 0.000000e+00 : f32
    %48 = vector.shape_cast %45 : vector<1x1024xf32> to vector<1x1024xf32>
    %49 = vector.broadcast %48 : vector<1x1024xf32> to vector<8x1024xf32>
    %50 = vector.broadcast %cst_11 : f32 to vector<8x1024xf32>
    %51 = arith.select %47, %49, %50 : vector<8x1024xi1>, vector<8x1024xf32>
    %52 = arith.addf %30, %51 : vector<8x1024xf32>
    %c2_i32 = arith.constant 2 : i32
    %c1024_i32_12 = arith.constant 1024 : i32
    %53 = arith.muli %c2_i32, %c1024_i32_12 : i32
    %54 = tpu.assume_multiple %53, 128 : i32
    %55 = arith.addi %5, %54 : i32
    %56 = vector.broadcast %55 : i32 to vector<1x1024xi32>
    %57 = arith.addi %56, %7 : vector<1x1024xi32>
    %c25093_i32_13 = arith.constant 25093 : i32
    %58 = vector.broadcast %c25093_i32_13 : i32 to vector<1x1024xi32>
    %59 = arith.cmpi slt, %57, %58 : vector<1x1024xi32>
    %c0_14 = arith.constant 0 : index
    %60 = arith.index_cast %54 : i32 to index
    %61 = vector.load %arg2[%c0_14, %60] : memref<1x8192xi32, #tpu.memory_space<vmem>>, vector<1x1024xi32>
    %c-1_i32_15 = arith.constant -1 : i32
    %62 = vector.broadcast %c-1_i32_15 : i32 to vector<1x1024xi32>
    %63 = arith.select %59, %61, %62 : vector<1x1024xi1>, vector<1x1024xi32>
    %c0_16 = arith.constant 0 : index
    %64 = arith.index_cast %54 : i32 to index
    %65 = vector.load %arg3[%c0_16, %64] : memref<1x8192xf32, #tpu.memory_space<vmem>>, vector<1x1024xf32>
    %cst_17 = arith.constant 0.000000e+00 : f32
    %66 = vector.broadcast %cst_17 : f32 to vector<1x1024xf32>
    %67 = arith.select %59, %65, %66 : vector<1x1024xi1>, vector<1x1024xf32>
    %68 = vector.broadcast %63 : vector<1x1024xi32> to vector<8x1024xi32>
    %69 = arith.cmpi eq, %68, %6 : vector<8x1024xi32>
    %cst_18 = arith.constant 0.000000e+00 : f32
    %70 = vector.shape_cast %67 : vector<1x1024xf32> to vector<1x1024xf32>
    %71 = vector.broadcast %70 : vector<1x1024xf32> to vector<8x1024xf32>
    %72 = vector.broadcast %cst_18 : f32 to vector<8x1024xf32>
    %73 = arith.select %69, %71, %72 : vector<8x1024xi1>, vector<8x1024xf32>
    %74 = arith.addf %52, %73 : vector<8x1024xf32>
    %c3_i32 = arith.constant 3 : i32
    %c1024_i32_19 = arith.constant 1024 : i32
    %75 = arith.muli %c3_i32, %c1024_i32_19 : i32
    %76 = tpu.assume_multiple %75, 128 : i32
    %77 = arith.addi %5, %76 : i32
    %78 = vector.broadcast %77 : i32 to vector<1x1024xi32>
    %79 = arith.addi %78, %7 : vector<1x1024xi32>
    %c25093_i32_20 = arith.constant 25093 : i32
    %80 = vector.broadcast %c25093_i32_20 : i32 to vector<1x1024xi32>
    %81 = arith.cmpi slt, %79, %80 : vector<1x1024xi32>
    %c0_21 = arith.constant 0 : index
    %82 = arith.index_cast %76 : i32 to index
    %83 = vector.load %arg2[%c0_21, %82] : memref<1x8192xi32, #tpu.memory_space<vmem>>, vector<1x1024xi32>
    %c-1_i32_22 = arith.constant -1 : i32
    %84 = vector.broadcast %c-1_i32_22 : i32 to vector<1x1024xi32>
    %85 = arith.select %81, %83, %84 : vector<1x1024xi1>, vector<1x1024xi32>
    %c0_23 = arith.constant 0 : index
    %86 = arith.index_cast %76 : i32 to index
    %87 = vector.load %arg3[%c0_23, %86] : memref<1x8192xf32, #tpu.memory_space<vmem>>, vector<1x1024xf32>
    %cst_24 = arith.constant 0.000000e+00 : f32
    %88 = vector.broadcast %cst_24 : f32 to vector<1x1024xf32>
    %89 = arith.select %81, %87, %88 : vector<1x1024xi1>, vector<1x1024xf32>
    %90 = vector.broadcast %85 : vector<1x1024xi32> to vector<8x1024xi32>
    %91 = arith.cmpi eq, %90, %6 : vector<8x1024xi32>
    %cst_25 = arith.constant 0.000000e+00 : f32
    %92 = vector.shape_cast %89 : vector<1x1024xf32> to vector<1x1024xf32>
    %93 = vector.broadcast %92 : vector<1x1024xf32> to vector<8x1024xf32>
    %94 = vector.broadcast %cst_25 : f32 to vector<8x1024xf32>
    %95 = arith.select %91, %93, %94 : vector<8x1024xi1>, vector<8x1024xf32>
    %96 = arith.addf %74, %95 : vector<8x1024xf32>
    %c4_i32_26 = arith.constant 4 : i32
    %c1024_i32_27 = arith.constant 1024 : i32
    %97 = arith.muli %c4_i32_26, %c1024_i32_27 : i32
    %98 = tpu.assume_multiple %97, 128 : i32
    %99 = arith.addi %5, %98 : i32
    %100 = vector.broadcast %99 : i32 to vector<1x1024xi32>
    %101 = arith.addi %100, %7 : vector<1x1024xi32>
    %c25093_i32_28 = arith.constant 25093 : i32
    %102 = vector.broadcast %c25093_i32_28 : i32 to vector<1x1024xi32>
    %103 = arith.cmpi slt, %101, %102 : vector<1x1024xi32>
    %c0_29 = arith.constant 0 : index
    %104 = arith.index_cast %98 : i32 to index
    %105 = vector.load %arg2[%c0_29, %104] : memref<1x8192xi32, #tpu.memory_space<vmem>>, vector<1x1024xi32>
    %c-1_i32_30 = arith.constant -1 : i32
    %106 = vector.broadcast %c-1_i32_30 : i32 to vector<1x1024xi32>
    %107 = arith.select %103, %105, %106 : vector<1x1024xi1>, vector<1x1024xi32>
    %c0_31 = arith.constant 0 : index
    %108 = arith.index_cast %98 : i32 to index
    %109 = vector.load %arg3[%c0_31, %108] : memref<1x8192xf32, #tpu.memory_space<vmem>>, vector<1x1024xf32>
    %cst_32 = arith.constant 0.000000e+00 : f32
    %110 = vector.broadcast %cst_32 : f32 to vector<1x1024xf32>
    %111 = arith.select %103, %109, %110 : vector<1x1024xi1>, vector<1x1024xf32>
    %112 = vector.broadcast %107 : vector<1x1024xi32> to vector<8x1024xi32>
    %113 = arith.cmpi eq, %112, %6 : vector<8x1024xi32>
    %cst_33 = arith.constant 0.000000e+00 : f32
    %114 = vector.shape_cast %111 : vector<1x1024xf32> to vector<1x1024xf32>
    %115 = vector.broadcast %114 : vector<1x1024xf32> to vector<8x1024xf32>
    %116 = vector.broadcast %cst_33 : f32 to vector<8x1024xf32>
    %117 = arith.select %113, %115, %116 : vector<8x1024xi1>, vector<8x1024xf32>
    %118 = arith.addf %96, %117 : vector<8x1024xf32>
    %c5_i32 = arith.constant 5 : i32
    %c1024_i32_34 = arith.constant 1024 : i32
    %119 = arith.muli %c5_i32, %c1024_i32_34 : i32
    %120 = tpu.assume_multiple %119, 128 : i32
    %121 = arith.addi %5, %120 : i32
    %122 = vector.broadcast %121 : i32 to vector<1x1024xi32>
    %123 = arith.addi %122, %7 : vector<1x1024xi32>
    %c25093_i32_35 = arith.constant 25093 : i32
    %124 = vector.broadcast %c25093_i32_35 : i32 to vector<1x1024xi32>
    %125 = arith.cmpi slt, %123, %124 : vector<1x1024xi32>
    %c0_36 = arith.constant 0 : index
    %126 = arith.index_cast %120 : i32 to index
    %127 = vector.load %arg2[%c0_36, %126] : memref<1x8192xi32, #tpu.memory_space<vmem>>, vector<1x1024xi32>
    %c-1_i32_37 = arith.constant -1 : i32
    %128 = vector.broadcast %c-1_i32_37 : i32 to vector<1x1024xi32>
    %129 = arith.select %125, %127, %128 : vector<1x1024xi1>, vector<1x1024xi32>
    %c0_38 = arith.constant 0 : index
    %130 = arith.index_cast %120 : i32 to index
    %131 = vector.load %arg3[%c0_38, %130] : memref<1x8192xf32, #tpu.memory_space<vmem>>, vector<1x1024xf32>
    %cst_39 = arith.constant 0.000000e+00 : f32
    %132 = vector.broadcast %cst_39 : f32 to vector<1x1024xf32>
    %133 = arith.select %125, %131, %132 : vector<1x1024xi1>, vector<1x1024xf32>
    %134 = vector.broadcast %129 : vector<1x1024xi32> to vector<8x1024xi32>
    %135 = arith.cmpi eq, %134, %6 : vector<8x1024xi32>
    %cst_40 = arith.constant 0.000000e+00 : f32
    %136 = vector.shape_cast %133 : vector<1x1024xf32> to vector<1x1024xf32>
    %137 = vector.broadcast %136 : vector<1x1024xf32> to vector<8x1024xf32>
    %138 = vector.broadcast %cst_40 : f32 to vector<8x1024xf32>
    %139 = arith.select %135, %137, %138 : vector<8x1024xi1>, vector<8x1024xf32>
    %140 = arith.addf %118, %139 : vector<8x1024xf32>
    %c6_i32 = arith.constant 6 : i32
    %c1024_i32_41 = arith.constant 1024 : i32
    %141 = arith.muli %c6_i32, %c1024_i32_41 : i32
    %142 = tpu.assume_multiple %141, 128 : i32
    %143 = arith.addi %5, %142 : i32
    %144 = vector.broadcast %143 : i32 to vector<1x1024xi32>
    %145 = arith.addi %144, %7 : vector<1x1024xi32>
    %c25093_i32_42 = arith.constant 25093 : i32
    %146 = vector.broadcast %c25093_i32_42 : i32 to vector<1x1024xi32>
    %147 = arith.cmpi slt, %145, %146 : vector<1x1024xi32>
    %c0_43 = arith.constant 0 : index
    %148 = arith.index_cast %142 : i32 to index
    %149 = vector.load %arg2[%c0_43, %148] : memref<1x8192xi32, #tpu.memory_space<vmem>>, vector<1x1024xi32>
    %c-1_i32_44 = arith.constant -1 : i32
    %150 = vector.broadcast %c-1_i32_44 : i32 to vector<1x1024xi32>
    %151 = arith.select %147, %149, %150 : vector<1x1024xi1>, vector<1x1024xi32>
    %c0_45 = arith.constant 0 : index
    %152 = arith.index_cast %142 : i32 to index
    %153 = vector.load %arg3[%c0_45, %152] : memref<1x8192xf32, #tpu.memory_space<vmem>>, vector<1x1024xf32>
    %cst_46 = arith.constant 0.000000e+00 : f32
    %154 = vector.broadcast %cst_46 : f32 to vector<1x1024xf32>
    %155 = arith.select %147, %153, %154 : vector<1x1024xi1>, vector<1x1024xf32>
    %156 = vector.broadcast %151 : vector<1x1024xi32> to vector<8x1024xi32>
    %157 = arith.cmpi eq, %156, %6 : vector<8x1024xi32>
    %cst_47 = arith.constant 0.000000e+00 : f32
    %158 = vector.shape_cast %155 : vector<1x1024xf32> to vector<1x1024xf32>
    %159 = vector.broadcast %158 : vector<1x1024xf32> to vector<8x1024xf32>
    %160 = vector.broadcast %cst_47 : f32 to vector<8x1024xf32>
    %161 = arith.select %157, %159, %160 : vector<8x1024xi1>, vector<8x1024xf32>
    %162 = arith.addf %140, %161 : vector<8x1024xf32>
    %c7_i32 = arith.constant 7 : i32
    %c1024_i32_48 = arith.constant 1024 : i32
    %163 = arith.muli %c7_i32, %c1024_i32_48 : i32
    %164 = tpu.assume_multiple %163, 128 : i32
    %165 = arith.addi %5, %164 : i32
    %166 = vector.broadcast %165 : i32 to vector<1x1024xi32>
    %167 = arith.addi %166, %7 : vector<1x1024xi32>
    %c25093_i32_49 = arith.constant 25093 : i32
    %168 = vector.broadcast %c25093_i32_49 : i32 to vector<1x1024xi32>
    %169 = arith.cmpi slt, %167, %168 : vector<1x1024xi32>
    %c0_50 = arith.constant 0 : index
    %170 = arith.index_cast %164 : i32 to index
    %171 = vector.load %arg2[%c0_50, %170] : memref<1x8192xi32, #tpu.memory_space<vmem>>, vector<1x1024xi32>
    %c-1_i32_51 = arith.constant -1 : i32
    %172 = vector.broadcast %c-1_i32_51 : i32 to vector<1x1024xi32>
    %173 = arith.select %169, %171, %172 : vector<1x1024xi1>, vector<1x1024xi32>
    %c0_52 = arith.constant 0 : index
    %174 = arith.index_cast %164 : i32 to index
    %175 = vector.load %arg3[%c0_52, %174] : memref<1x8192xf32, #tpu.memory_space<vmem>>, vector<1x1024xf32>
    %cst_53 = arith.constant 0.000000e+00 : f32
    %176 = vector.broadcast %cst_53 : f32 to vector<1x1024xf32>
    %177 = arith.select %169, %175, %176 : vector<1x1024xi1>, vector<1x1024xf32>
    %178 = vector.broadcast %173 : vector<1x1024xi32> to vector<8x1024xi32>
    %179 = arith.cmpi eq, %178, %6 : vector<8x1024xi32>
    %cst_54 = arith.constant 0.000000e+00 : f32
    %180 = vector.shape_cast %177 : vector<1x1024xf32> to vector<1x1024xf32>
    %181 = vector.broadcast %180 : vector<1x1024xf32> to vector<8x1024xf32>
    %182 = vector.broadcast %cst_54 : f32 to vector<8x1024xf32>
    %183 = arith.select %179, %181, %182 : vector<8x1024xi1>, vector<8x1024xf32>
    %184 = arith.addf %162, %183 : vector<8x1024xf32>
    %c8_i32 = arith.constant 8 : i32
    %c0_55 = arith.constant 0 : index
    %c0_56 = arith.constant 0 : index
    %c0_57 = arith.constant 0 : index
    %185 = vector.load %arg4[%c0_55, %c0_56, %c0_57] : memref<1x8x1024xf32, #tpu.memory_space<vmem>>, vector<1x8x1024xf32>
    %186 = vector.shape_cast %185 : vector<1x8x1024xf32> to vector<8x1024xf32>
    %187 = arith.addf %186, %184 : vector<8x1024xf32>
    %c0_58 = arith.constant 0 : index
    %c0_59 = arith.constant 0 : index
    %c0_60 = arith.constant 0 : index
    %188 = vector.load %arg4[%c0_58, %c0_59, %c0_60] : memref<1x8x1024xf32, #tpu.memory_space<vmem>>, vector<1x8x1024xf32>
    %189 = vector.shape_cast %188 : vector<1x8x1024xf32> to vector<8x1024xf32>
    %190 = vector.shape_cast %187 : vector<8x1024xf32> to vector<1x8x1024xf32>
    tpu.vector_store %arg4[%c0_58, %c0_59, %c0_60], %190 {strides = array<i32>} : memref<1x8x1024xf32, #tpu.memory_space<vmem>>, vector<1x8x1024xf32>,
    return
  }
  func.func @transform_0(%arg0: i32, %arg1: i32) -> (i32, i32) {
    %c4_i32 = arith.constant 4 : i32
    %0 = arith.muli %arg0, %c4_i32 : i32
    %1 = arith.addi %0, %arg1 : i32
    %c3_i32 = arith.constant 3 : i32
    %2 = arith.minsi %1, %c3_i32 : i32
    %c0_i32 = arith.constant 0 : i32
    %c0_i32_0 = arith.constant 0 : i32
    return %c0_i32, %2 : i32, i32
  }
  func.func @transform_1(%arg0: i32, %arg1: i32) -> (i32, i32) {
    %c4_i32 = arith.constant 4 : i32
    %0 = arith.muli %arg0, %c4_i32 : i32
    %1 = arith.addi %0, %arg1 : i32
    %c3_i32 = arith.constant 3 : i32
    %2 = arith.minsi %1, %c3_i32 : i32
    %c0_i32 = arith.constant 0 : i32
    %c0_i32_0 = arith.constant 0 : i32
    return %c0_i32, %2 : i32, i32
  }
  func.func @transform_2(%arg0: i32, %arg1: i32) -> (i32, i32, i32) {
    %c0_i32 = arith.constant 0 : i32
    %c0_i32_0 = arith.constant 0 : i32
    %c0_i32_1 = arith.constant 0 : i32
    return %arg0, %c0_i32, %c0_i32_0 : i32, i32, i32
  }
}

</mosaic_0001>

<llo_original>
// kernel: tpu_custom_call.1
$region0: #{tpu_custom_call.1}
  #allocation0 [shape = 'u32[]', space=smem, size = 0x4, offset = 0x4, fixed_abs, tag = 'smem constant byte address 0x4 - core index']
  #allocation1 [shape = 'u32[72,128]{1,0:T(1,128)}', space=vmem, size = 0x9000, scoped, tag = 'internal scratch']
  %s0 = inlined_call_operand.hbm [shape: s32[1,25093], index: 0, kind: input, shape index: {}]
  %s1 = inlined_call_operand.hbm [shape: f32[1,25093], index: 1, kind: input, shape index: {}]
  %s2 = inlined_call_operand.hbm [shape: f32[1,8,1024], index: 2, kind: output, shape index: {}]
  %s3 = sld [smem:[#allocation0]]
  $region53: #{tpu_custom_call.1} parent=0
    _
  %s5 = ssub.s32 1, %s3
  %s6 = scalar_select 0, %s5, %s3
  $region1: #{tpu_custom_call.1} parent=0
    #allocation2 [shape = 'u8[65536]{0}', space=vmem, size = 0x10000, scoped, tag = 'input window, operand 0']
    #allocation3 [shape = 's32[2]{0}', space=sflag, size = 0x8, scoped, tag = 'scoped memory for tpu_custom_call.1']
    #allocation4 [shape = 's32[2]{0}', space=sflag, size = 0x8, scoped, tag = 'scoped memory for tpu_custom_call.1']
    #allocation5 [shape = 'u8[65536]{0}', space=vmem, size = 0x10000, scoped, tag = 'input window, operand 1']
    #allocation6 [shape = 's32[2]{0}', space=sflag, size = 0x8, scoped, tag = 'scoped memory for tpu_custom_call.1']
    #allocation7 [shape = 'u8[32768]{0}', space=vmem, size = 0x8000, scoped, tag = 'output window, operand 0, single buffered']
    %7 = vsyncpa [#allocation3], 0
    %s8 = scalar_lea.sflag [#allocation3], 1
    %9 = vsyncpa %s8, 0
    %10 = vsyncpa [#allocation6], 0
    %s11 = scalar_lea.sflag [#allocation6], 1
    %12 = vsyncpa %s11, 0
    %13 = vsyncpa [#allocation4], 0
    loop: start=0, step=1, limit=6
    $region2: #{tpu_custom_call.1} parent=1 // loop_pre_header
      _
    $region3: #{tpu_custom_call.1} parent=1 // loop_header
      %s15 = sphi 0, %s19
      %p16 = scmp.ge.s32.totalorder %s15, 6
      %s22 = sphi 0, %s34
      %s23 = sphi 0, %s30
      %s24 = sphi 0, %s22
      %s25 = sphi 0, %s23
      %s26 = sphi 0, %s24
      %s27 = sphi 0, %s25
      %s45 = sphi 0, %s47
      %s48 = sphi 0, %s45
      %s49 = sphi 0, %s48
      %s65 = sphi 0, %s49
      %s79 = sphi 0, %s81
      %s82 = sphi 0, %s79
      %s83 = sphi 0, %s82
      %s99 = sphi 0, %s83
      %s105 = sphi 0, %s107
      %s108 = sphi 0, %s105
      %s109 = sphi 0, %s108
      %s125 = sphi 0, %s109
    $region4: #{tpu_custom_call.1} parent=1 // loop_header_branch
      %18 = sbr.rel (%p16) target = $region8
    $region5: #{tpu_custom_call.1} parent=1 // loop_body
      %s20 = ssub.s32 %s15, 1
      %s21 = ssub.s32 %s15, 2
      %s28 = sadd.s32 1, %s23
      %p29 = scmp.ge.s32.totalorder %s28, 4
      %s30 = scalar_select %p29, 0, %s28
      %s31 = sadd.s32 1, %s22
      %s32 = scalar_select %p29, %s31, %s22
      %p33 = scmp.ge.s32.totalorder %s32, 1
      %s34 = scalar_select %p33, 0, %s32
      %s35 = smul.u32 %s22, 4
      %s36 = sadd.s32 %s35, %s23
      %p37 = scmp.lt.s32.totalorder %s36, 3
      %s38 = scalar_select %p37, %s36, 3
      %s39 = smul.u32 %s34, 4
      %s40 = sadd.s32 %s39, %s30
      %p41 = scmp.lt.s32.totalorder %s40, 3
      %s42 = scalar_select %p41, %s40, 3
      %s43 = ssub.s32 %s38, %s42
      %p44 = scmp.eq.s32.totalorder %s43, 0
      %s46 = sadd.s32 %s45, 1
      %s47 = scalar_select %p44, %s45, %s46
      %p50 = pneg %p44
      %p51 = scmp.eq.s32.totalorder %s15, 3
      %p52 = por %p50, %p51
      %p53 = scmp.ne.s32.totalorder %s45, %s48
      %p54 = scmp.eq.s32.totalorder %s15, 0
      %p55 = por %p53, %p54
      %p56 = scmp.ne.s32.totalorder %s45, %s48
      %p57 = scmp.eq.s32.totalorder %s20, 3
      %p58 = por %p56, %p57
      %p59 = scmp.ne.s32.totalorder %s48, %s49
      %p60 = scmp.eq.s32.totalorder %s20, 0
      %p61 = por %p59, %p60
      %p62 = scmp.ne.s32.totalorder %s48, %s49
      %p63 = scmp.eq.s32.totalorder %s21, 3
      %p64 = por %p62, %p63
      %p66 = scmp.ne.s32.totalorder %s49, %s65
      %p67 = scmp.eq.s32.totalorder %s21, 0
      %p68 = por %p66, %p67
      %s69 = smul.u32 %s22, 4
      %s70 = sadd.s32 %s69, %s23
      %p71 = scmp.lt.s32.totalorder %s70, 3
      %s72 = scalar_select %p71, %s70, 3
      %s73 = smul.u32 %s34, 4
      %s74 = sadd.s32 %s73, %s30
      %p75 = scmp.lt.s32.totalorder %s74, 3
      %s76 = scalar_select %p75, %s74, 3
      %s77 = ssub.s32 %s72, %s76
      %p78 = scmp.eq.s32.totalorder %s77, 0
      %s80 = sadd.s32 %s79, 1
      %s81 = scalar_select %p78, %s79, %s80
      %p84 = pneg %p78
      %p85 = scmp.eq.s32.totalorder %s15, 3
      %p86 = por %p84, %p85
      %p87 = scmp.ne.s32.totalorder %s79, %s82
      %p88 = scmp.eq.s32.totalorder %s15, 0
      %p89 = por %p87, %p88
      %p90 = scmp.ne.s32.totalorder %s79, %s82
      %p91 = scmp.eq.s32.totalorder %s20, 3
      %p92 = por %p90, %p91
      %p93 = scmp.ne.s32.totalorder %s82, %s83
      %p94 = scmp.eq.s32.totalorder %s20, 0
      %p95 = por %p93, %p94
      %p96 = scmp.ne.s32.totalorder %s82, %s83
      %p97 = scmp.eq.s32.totalorder %s21, 3
      %p98 = por %p96, %p97
      %p100 = scmp.ne.s32.totalorder %s83, %s99
      %p101 = scmp.eq.s32.totalorder %s21, 0
      %p102 = por %p100, %p101
      %s103 = ssub.s32 %s22, %s34
      %p104 = scmp.eq.s32.totalorder %s103, 0
      %s106 = sadd.s32 %s105, 1
      %s107 = scalar_select %p104, %s105, %s106
      %p110 = pneg %p104
      %p111 = scmp.eq.s32.totalorder %s15, 3
      %p112 = por %p110, %p111
      %p113 = scmp.ne.s32.totalorder %s105, %s108
      %p114 = scmp.eq.s32.totalorder %s15, 0
      %p115 = por %p113, %p114
      %p116 = scmp.ne.s32.totalorder %s105, %s108
      %p117 = scmp.eq.s32.totalorder %s20, 3
      %p118 = por %p116, %p117
      %p119 = scmp.ne.s32.totalorder %s108, %s109
      %p120 = scmp.eq.s32.totalorder %s20, 0
      %p121 = por %p119, %p120
      %p122 = scmp.ne.s32.totalorder %s108, %s109
      %p123 = scmp.eq.s32.totalorder %s21, 3
      %p124 = por %p122, %p123
      %p126 = scmp.ne.s32.totalorder %s109, %s125
      %p127 = scmp.eq.s32.totalorder %s21, 0
      %p128 = por %p126, %p127
      %p129 = scmp.le.s32.totalorder 1, %s15
      %p130 = scmp.lt.s32.totalorder %s15, 5
      %p131 = pnand %p129, %p130
      %p132 = pneg %p131
      // Predicated region
      $region9: #{tpu_custom_call.1} parent=5 // pred_check
        _
      $region10: #{tpu_custom_call.1} parent=5 // pred_check_branch
        %134 = sbr.rel (%p131) target = $region12
      $region11: #{tpu_custom_call.1} parent=5 // pred_region
        %s135 = ssub.s32 %s15, 1
      $region12: #{tpu_custom_call.1} parent=5 // pred_fallthru
        _
      %p136 = scmp.lt.s32.totalorder %s15, 4
      // Predicated region
      $region13: #{tpu_custom_call.1} parent=5 // pred_check
        %p137 = pneg %p136
      $region14: #{tpu_custom_call.1} parent=5 // pred_check_branch
        %139 = sbr.rel (%p137) target = $region16
      $region15: #{tpu_custom_call.1} parent=5 // pred_region
        // Predicated region
        $region17: #{tpu_custom_call.1} parent=15 // pred_check
          %p140 = pneg %p55
        $region18: #{tpu_custom_call.1} parent=15 // pred_check_branch
          %142 = sbr.rel (%p140) target = $region20
        $region19: #{tpu_custom_call.1} parent=15 // pred_region
          %s143 = sand.u32 %s45, 1
          %s144 = scalar_lea.sflag [#allocation3], %s143
          %s145 = sand.u32 %s45, 1
          %s146 = smul.addr %s145, 64
          %s147 = scalar_lea.vmem [#allocation2], %s146
          %s148 = smul.u32 %s22, 4
          %s149 = sadd.s32 %s148, %s23
          %p150 = scmp.lt.s32.totalorder %s149, 3
          %s151 = scalar_select %p150, %s149, 3
          %s152 = smul.u32 64, %s151
          %s153 = ssub.s32 197, %s152
          %p154 = scmp.lt.s32.totalorder %s153, 64
          %s155 = scalar_select %p154, %s153, 64
          %s156 = ssub.s32 64, %s155
          %s157 = sshll.u32 %s156, 4
          %158 = vsyncadd %s144, %s157
          %p159 = scmp.ne.s32.totalorder 0, %s155
          %s160 = scalar_lea.hbm %s0, %s152
          %s161 = sshll.u32 %s155, 4
          %s162 = sshll.u32 %s160, 4
          %s163 = int_to_ptr.hbm [resolvable:$true] %s162
          %s164 = sshll.u32 %s147, 4
          %s165 = int_to_ptr.vmem [resolvable:$true] %s164
          %167 = dma.hbm_to_vmem [thread:$0]  (%p159), %s163, %s161, %s165, %s144
        $region20: #{tpu_custom_call.1} parent=15 // pred_fallthru
          _
        // Predicated region
        $region21: #{tpu_custom_call.1} parent=15 // pred_check
          %p168 = pneg %p89
        $region22: #{tpu_custom_call.1} parent=15 // pred_check_branch
          %170 = sbr.rel (%p168) target = $region24
        $region23: #{tpu_custom_call.1} parent=15 // pred_region
          %s171 = sand.u32 %s79, 1
          %s172 = scalar_lea.sflag [#allocation6], %s171
          %s173 = sand.u32 %s79, 1
          %s174 = smul.addr %s173, 64
          %s175 = scalar_lea.vmem [#allocation5], %s174
          %s176 = smul.u32 %s22, 4
          %s177 = sadd.s32 %s176, %s23
          %p178 = scmp.lt.s32.totalorder %s177, 3
          %s179 = scalar_select %p178, %s177, 3
          %s180 = smul.u32 64, %s179
          %s181 = ssub.s32 197, %s180
          %p182 = scmp.lt.s32.totalorder %s181, 64
          %s183 = scalar_select %p182, %s181, 64
          %s184 = ssub.s32 64, %s183
          %s185 = sshll.u32 %s184, 4
          %186 = vsyncadd %s172, %s185
          %p187 = scmp.ne.s32.totalorder 0, %s183
          %s188 = scalar_lea.hbm %s1, %s180
          %s189 = sshll.u32 %s183, 4
          %s190 = sshll.u32 %s188, 4
          %s191 = int_to_ptr.hbm [resolvable:$true] %s190
          %s192 = sshll.u32 %s175, 4
          %s193 = int_to_ptr.vmem [resolvable:$true] %s192
          %195 = dma.hbm_to_vmem [thread:$0]  (%p187), %s191, %s189, %s193, %s172
        $region24: #{tpu_custom_call.1} parent=15 // pred_fallthru
          _
      $region16: #{tpu_custom_call.1} parent=5 // pred_fallthru
        _
      %p196 = scmp.le.s32.totalorder 1, %s15
      %p197 = scmp.lt.s32.totalorder %s15, 5
      %p198 = pnand %p196, %p197
      %p199 = pneg %p198
      // Predicated region
      $region25: #{tpu_custom_call.1} parent=5 // pred_check
        _
      $region26: #{tpu_custom_call.1} parent=5 // pred_check_branch
        %201 = sbr.rel (%p198) target = $region28
      $region27: #{tpu_custom_call.1} parent=5 // pred_region
        %s202 = ssub.s32 %s15, 1
        %s203 = sand.u32 %s48, 1
        %s204 = scalar_lea.sflag [#allocation3], %s203
        %s205 = sand.u32 %s48, 1
        %s206 = smul.addr %s205, 64
        %s207 = scalar_lea.vmem [#allocation2], %s206
        // Predicated region
        $region29: #{tpu_custom_call.1} parent=27 // pred_check
          %p208 = pneg %p61
        $region30: #{tpu_custom_call.1} parent=27 // pred_check_branch
          %210 = sbr.rel (%p208) target = $region32
        $region31: #{tpu_custom_call.1} parent=27 // pred_region
          %212 = dma.done %s204, 1024
        $region32: #{tpu_custom_call.1} parent=27 // pred_fallthru
          _
        %s213 = sand.u32 %s82, 1
        %s214 = scalar_lea.sflag [#allocation6], %s213
        %s215 = sand.u32 %s82, 1
        %s216 = smul.addr %s215, 64
        %s217 = scalar_lea.vmem [#allocation5], %s216
        // Predicated region
        $region33: #{tpu_custom_call.1} parent=27 // pred_check
          %p218 = pneg %p95
        $region34: #{tpu_custom_call.1} parent=27 // pred_check_branch
          %220 = sbr.rel (%p218) target = $region36
        $region35: #{tpu_custom_call.1} parent=27 // pred_region
          %222 = dma.done %s214, 1024
        $region36: #{tpu_custom_call.1} parent=27 // pred_fallthru
          _
        %s223 = sand.u32 %s48, 1
        %s224 = scalar_lea.sflag [#allocation3], %s223
        %s225 = sand.u32 %s48, 1
        %s226 = smul.addr %s225, 64
        %s227 = scalar_lea.vmem [#allocation2], %s226
        %p228 = pneg %p61
        %p229 = pneg %p58
        %s230 = sand.u32 %s82, 1
        %s231 = scalar_lea.sflag [#allocation6], %s230
        %s232 = sand.u32 %s82, 1
        %s233 = smul.addr %s232, 64
        %s234 = scalar_lea.vmem [#allocation5], %s233
        %p235 = pneg %p95
        %p236 = pneg %p92
        %p237 = pneg %p121
        %p238 = pneg %p118
        %s239 = smul.u32 %s24, 4
        %s240 = sadd.s32 %s239, %s25
        %p241 = scmp.lt.s32.totalorder %s240, 3
        %s242 = scalar_select %p241, %s240, 3
        %s243 = smul.u32 64, %s242
        %s244 = ssub.s32 197, %s243
        %p245 = scmp.lt.s32.totalorder %s244, 64
        %s246 = scalar_select %p245, %s244, 64
        %s247 = smul.u32 %s24, 4
        %s248 = sadd.s32 %s247, %s25
        %p249 = scmp.lt.s32.totalorder %s248, 3
        %s250 = scalar_select %p249, %s248, 3
        %s251 = smul.u32 64, %s250
        %s252 = ssub.s32 197, %s251
        %p253 = scmp.lt.s32.totalorder %s252, 64
        %s254 = scalar_select %p253, %s252, 64
        %p255 = scmp.eq.s32.totalorder %s25, 0
        // Predicated region
        $region37: #{tpu_custom_call.1} parent=27 // pred_check
          %p256 = pneg %p255
        $region38: #{tpu_custom_call.1} parent=27 // pred_check_branch
          %258 = sbr.rel (%p256) target = $region40
        $region39: #{tpu_custom_call.1} parent=27 // pred_region
          %259 = vst [vmem:[#allocation7] sm:$0xff] 0.0
          %260 = vst [vmem:[#allocation7 + $0x8] sm:$0xff] 0.0
          %261 = vst [vmem:[#allocation7 + $0x10] sm:$0xff] 0.0
          %262 = vst [vmem:[#allocation7 + $0x18] sm:$0xff] 0.0
          %263 = vst [vmem:[#allocation7 + $0x20] sm:$0xff] 0.0
          %264 = vst [vmem:[#allocation7 + $0x28] sm:$0xff] 0.0
          %265 = vst [vmem:[#allocation7 + $0x30] sm:$0xff] 0.0
          %266 = vst [vmem:[#allocation7 + $0x38] sm:$0xff] 0.0
        $region40: #{tpu_custom_call.1} parent=27 // pred_fallthru
          _
        %s267 = smul.u32 %s24, 4
        %s268 = sadd.s32 %s267, %s25
        %s269 = smul.u32 %s268, 8192
        %v270 = vlaneseq
        %v271 = vshrl.u32 %v270, 7
        %v272 = vlaneseq
        %v273 = vand.u32 %v272, 127
        %v274 = vadd.s32 %v273, 128
        %v275 = vadd.s32 %v273, 256
        %v276 = vadd.s32 %v273, 384
        %v277 = vadd.s32 %v273, 512
        %v278 = vadd.s32 %v273, 640
        %v279 = vadd.s32 %v273, 768
        %v280 = vadd.s32 %v273, 896
        %s281 = sadd.s32 %s269, 0
        %v282 = vstv %s281
        %v283 = vadd.s32 %v282, %v273
        %v284 = vadd.s32 %v282, %v274
        %v285 = vadd.s32 %v282, %v275
        %v286 = vadd.s32 %v282, %v276
        %v287 = vadd.s32 %v282, %v277
        %v288 = vadd.s32 %v282, %v278
        %v289 = vadd.s32 %v282, %v279
        %v290 = vadd.s32 %v282, %v280
        %vm291 = vcmp.lt.s32.totalorder %v283, 25093
        %vm292 = vcmp.lt.s32.totalorder %v284, 25093
        %vm293 = vcmp.lt.s32.totalorder %v285, 25093
        %vm294 = vcmp.lt.s32.totalorder %v286, 25093
        %vm295 = vcmp.lt.s32.totalorder %v287, 25093
        %vm296 = vcmp.lt.s32.totalorder %v288, 25093
        %vm297 = vcmp.lt.s32.totalorder %v289, 25093
        %vm298 = vcmp.lt.s32.totalorder %v290, 25093
        %v299 = vld [vmem:[%s207] sm:$0xff]
        %v300 = vperm.slane %v299, 0
        %v301 = vperm.slane %v299, 1
        %v302 = vperm.slane %v299, 2
        %v303 = vperm.slane %v299, 3
        %v304 = vperm.slane %v299, 4
        %v305 = vperm.slane %v299, 5
        %v306 = vperm.slane %v299, 6
        %v307 = vperm.slane %v299, 7
        %v308 = vsel %vm291, %v300, 4294967295
        %v309 = vsel %vm292, %v301, 4294967295
        %v310 = vsel %vm293, %v302, 4294967295
        %v311 = vsel %vm294, %v303, 4294967295
        %v312 = vsel %vm295, %v304, 4294967295
        %v313 = vsel %vm296, %v305, 4294967295
        %v314 = vsel %vm297, %v306, 4294967295
        %v315 = vsel %vm298, %v307, 4294967295
        %v316 = vld [vmem:[%s217] sm:$0xff]
        %v318 = vperm.slane %v316, 0
        %v319 = vperm.slane %v316, 1
        %v320 = vperm.slane %v316, 2
        %v321 = vperm.slane %v316, 3
        %v322 = vperm.slane %v316, 4
        %v323 = vperm.slane %v316, 5
        %v324 = vperm.slane %v316, 6
        %v325 = vperm.slane %v316, 7
        %v334 = vsel %vm291, %v318, 0.0
        %v335 = vsel %vm292, %v319, 0.0
        %v336 = vsel %vm293, %v320, 0.0
        %v337 = vsel %vm294, %v321, 0.0
        %v338 = vsel %vm295, %v322, 0.0
        %v339 = vsel %vm296, %v323, 0.0
        %v340 = vsel %vm297, %v324, 0.0
        %v341 = vsel %vm298, %v325, 0.0
        %v342 = vperm.slane %v308, 0
        %v343 = vperm.slane %v309, 0
        %v344 = vperm.slane %v310, 0
        %v345 = vperm.slane %v311, 0
        %v346 = vperm.slane %v312, 0
        %v347 = vperm.slane %v313, 0
        %v348 = vperm.slane %v314, 0
        %v349 = vperm.slane %v315, 0
        %vm350 = vcmp.eq.s32.totalorder %v342, %v271
        %vm351 = vcmp.eq.s32.totalorder %v343, %v271
        %vm352 = vcmp.eq.s32.totalorder %v344, %v271
        %vm353 = vcmp.eq.s32.totalorder %v345, %v271
        %vm354 = vcmp.eq.s32.totalorder %v346, %v271
        %vm355 = vcmp.eq.s32.totalorder %v347, %v271
        %vm356 = vcmp.eq.s32.totalorder %v348, %v271
        %vm357 = vcmp.eq.s32.totalorder %v349, %v271
        %v358 = vperm.slane %v334, 0
        %v359 = vperm.slane %v335, 0
        %v360 = vperm.slane %v336, 0
        %v361 = vperm.slane %v337, 0
        %v362 = vperm.slane %v338, 0
        %v363 = vperm.slane %v339, 0
        %v364 = vperm.slane %v340, 0
        %v365 = vperm.slane %v341, 0
        %v366 = vsel %vm350, %v358, 0.0
        %v367 = vsel %vm351, %v359, 0.0
        %v368 = vsel %vm352, %v360, 0.0
        %v369 = vsel %vm353, %v361, 0.0
        %v370 = vsel %vm354, %v362, 0.0
        %v371 = vsel %vm355, %v363, 0.0
        %v372 = vsel %vm356, %v364, 0.0
        %v373 = vsel %vm357, %v365, 0.0
        %v374 = vadd.f32 %v366, 0.0
        %v375 = vadd.f32 %v367, 0.0
        %v376 = vadd.f32 %v368, 0.0
        %v377 = vadd.f32 %v369, 0.0
        %v378 = vadd.f32 %v370, 0.0
        %v379 = vadd.f32 %v371, 0.0
        %v380 = vadd.f32 %v372, 0.0
        %v381 = vadd.f32 %v373, 0.0
        %s382 = sadd.s32 %s269, 1024
        %v383 = vstv %s382
        %v384 = vadd.s32 %v383, %v273
        %v385 = vadd.s32 %v383, %v274
        %v386 = vadd.s32 %v383, %v275
        %v387 = vadd.s32 %v383, %v276
        %v388 = vadd.s32 %v383, %v277
        %v389 = vadd.s32 %v383, %v278
        %v390 = vadd.s32 %v383, %v279
        %v391 = vadd.s32 %v383, %v280
        %vm392 = vcmp.lt.s32.totalorder %v384, 25093
        %vm393 = vcmp.lt.s32.totalorder %v385, 25093
        %vm394 = vcmp.lt.s32.totalorder %v386, 25093
        %vm395 = vcmp.lt.s32.totalorder %v387, 25093
        %vm396 = vcmp.lt.s32.totalorder %v388, 25093
        %vm397 = vcmp.lt.s32.totalorder %v389, 25093
        %vm398 = vcmp.lt.s32.totalorder %v390, 25093
        %vm399 = vcmp.lt.s32.totalorder %v391, 25093
        %s400 = scalar_lea.vmem %s207, 8 [#allocation2]
        %v401 = vld [vmem:[%s400] sm:$0xff]
        %v402 = vperm.slane %v401, 0
        %v403 = vperm.slane %v401, 1
        %v404 = vperm.slane %v401, 2
        %v405 = vperm.slane %v401, 3
        %v406 = vperm.slane %v401, 4
        %v407 = vperm.slane %v401, 5
        %v408 = vperm.slane %v401, 6
        %v409 = vperm.slane %v401, 7
        %v410 = vsel %vm392, %v402, 4294967295
        %v411 = vsel %vm393, %v403, 4294967295
        %v412 = vsel %vm394, %v404, 4294967295
        %v413 = vsel %vm395, %v405, 4294967295
        %v414 = vsel %vm396, %v406, 4294967295
        %v415 = vsel %vm397, %v407, 4294967295
        %v416 = vsel %vm398, %v408, 4294967295
        %v417 = vsel %vm399, %v409, 4294967295
        %s418 = scalar_lea.vmem %s217, 8 [#allocation5]
        %v419 = vld [vmem:[%s418] sm:$0xff]
        %v421 = vperm.slane %v419, 0
        %v422 = vperm.slane %v419, 1
        %v423 = vperm.slane %v419, 2
        %v424 = vperm.slane %v419, 3
        %v425 = vperm.slane %v419, 4
        %v426 = vperm.slane %v419, 5
        %v427 = vperm.slane %v419, 6
        %v428 = vperm.slane %v419, 7
        %v437 = vsel %vm392, %v421, 0.0
        %v438 = vsel %vm393, %v422, 0.0
        %v439 = vsel %vm394, %v423, 0.0
        %v440 = vsel %vm395, %v424, 0.0
        %v441 = vsel %vm396, %v425, 0.0
        %v442 = vsel %vm397, %v426, 0.0
        %v443 = vsel %vm398, %v427, 0.0
        %v444 = vsel %vm399, %v428, 0.0
        %v445 = vperm.slane %v410, 0
        %v446 = vperm.slane %v411, 0
        %v447 = vperm.slane %v412, 0
        %v448 = vperm.slane %v413, 0
        %v449 = vperm.slane %v414, 0
        %v450 = vperm.slane %v415, 0
        %v451 = vperm.slane %v416, 0
        %v452 = vperm.slane %v417, 0
        %vm453 = vcmp.eq.s32.totalorder %v445, %v271
        %vm454 = vcmp.eq.s32.totalorder %v446, %v271
        %vm455 = vcmp.eq.s32.totalorder %v447, %v271
        %vm456 = vcmp.eq.s32.totalorder %v448, %v271
        %vm457 = vcmp.eq.s32.totalorder %v449, %v271
        %vm458 = vcmp.eq.s32.totalorder %v450, %v271
        %vm459 = vcmp.eq.s32.totalorder %v451, %v271
        %vm460 = vcmp.eq.s32.totalorder %v452, %v271
        %v461 = vperm.slane %v437, 0
        %v462 = vperm.slane %v438, 0
        %v463 = vperm.slane %v439, 0
        %v464 = vperm.slane %v440, 0
        %v465 = vperm.slane %v441, 0
        %v466 = vperm.slane %v442, 0
        %v467 = vperm.slane %v443, 0
        %v468 = vperm.slane %v444, 0
        %v469 = vsel %vm453, %v461, 0.0
        %v470 = vsel %vm454, %v462, 0.0
        %v471 = vsel %vm455, %v463, 0.0
        %v472 = vsel %vm456, %v464, 0.0
        %v473 = vsel %vm457, %v465, 0.0
        %v474 = vsel %vm458, %v466, 0.0
        %v475 = vsel %vm459, %v467, 0.0
        %v476 = vsel %vm460, %v468, 0.0
        %v477 = vadd.f32 %v374, %v469
        %v478 = vadd.f32 %v375, %v470
        %v479 = vadd.f32 %v376, %v471
        %v480 = vadd.f32 %v377, %v472
        %v481 = vadd.f32 %v378, %v473
        %v482 = vadd.f32 %v379, %v474
        %v483 = vadd.f32 %v380, %v475
        %v484 = vadd.f32 %v381, %v476
        %s485 = sadd.s32 %s269, 2048
        %v486 = vstv %s485
        %v487 = vadd.s32 %v486, %v273
        %v488 = vadd.s32 %v486, %v274
        %v489 = vadd.s32 %v486, %v275
        %v490 = vadd.s32 %v486, %v276
        %v491 = vadd.s32 %v486, %v277
        %v492 = vadd.s32 %v486, %v278
        %v493 = vadd.s32 %v486, %v279
        %v494 = vadd.s32 %v486, %v280
        %vm495 = vcmp.lt.s32.totalorder %v487, 25093
        %vm496 = vcmp.lt.s32.totalorder %v488, 25093
        %vm497 = vcmp.lt.s32.totalorder %v489, 25093
        %vm498 = vcmp.lt.s32.totalorder %v490, 25093
        %vm499 = vcmp.lt.s32.totalorder %v491, 25093
        %vm500 = vcmp.lt.s32.totalorder %v492, 25093
        %vm501 = vcmp.lt.s32.totalorder %v493, 25093
        %vm502 = vcmp.lt.s32.totalorder %v494, 25093
        %s503 = scalar_lea.vmem %s207, 16 [#allocation2]
        %v504 = vld [vmem:[%s503] sm:$0xff]
        %v505 = vperm.slane %v504, 0
        %v506 = vperm.slane %v504, 1
        %v507 = vperm.slane %v504, 2
        %v508 = vperm.slane %v504, 3
        %v509 = vperm.slane %v504, 4
        %v510 = vperm.slane %v504, 5
        %v511 = vperm.slane %v504, 6
        %v512 = vperm.slane %v504, 7
        %v513 = vsel %vm495, %v505, 4294967295
        %v514 = vsel %vm496, %v506, 4294967295
        %v515 = vsel %vm497, %v507, 4294967295
        %v516 = vsel %vm498, %v508, 4294967295
        %v517 = vsel %vm499, %v509, 4294967295
        %v518 = vsel %vm500, %v510, 4294967295
        %v519 = vsel %vm501, %v511, 4294967295
        %v520 = vsel %vm502, %v512, 4294967295
        %s521 = scalar_lea.vmem %s217, 16 [#allocation5]
        %v522 = vld [vmem:[%s521] sm:$0xff]
        %v524 = vperm.slane %v522, 0
        %v525 = vperm.slane %v522, 1
        %v526 = vperm.slane %v522, 2
        %v527 = vperm.slane %v522, 3
        %v528 = vperm.slane %v522, 4
        %v529 = vperm.slane %v522, 5
        %v530 = vperm.slane %v522, 6
        %v531 = vperm.slane %v522, 7
        %v540 = vsel %vm495, %v524, 0.0
        %v541 = vsel %vm496, %v525, 0.0
        %v542 = vsel %vm497, %v526, 0.0
        %v543 = vsel %vm498, %v527, 0.0
        %v544 = vsel %vm499, %v528, 0.0
        %v545 = vsel %vm500, %v529, 0.0
        %v546 = vsel %vm501, %v530, 0.0
        %v547 = vsel %vm502, %v531, 0.0
        %v548 = vperm.slane %v513, 0
        %v549 = vperm.slane %v514, 0
        %v550 = vperm.slane %v515, 0
        %v551 = vperm.slane %v516, 0
        %v552 = vperm.slane %v517, 0
        %v553 = vperm.slane %v518, 0
        %v554 = vperm.slane %v519, 0
        %v555 = vperm.slane %v520, 0
        %vm556 = vcmp.eq.s32.totalorder %v548, %v271
        %vm557 = vcmp.eq.s32.totalorder %v549, %v271
        %vm558 = vcmp.eq.s32.totalorder %v550, %v271
        %vm559 = vcmp.eq.s32.totalorder %v551, %v271
        %vm560 = vcmp.eq.s32.totalorder %v552, %v271
        %vm561 = vcmp.eq.s32.totalorder %v553, %v271
        %vm562 = vcmp.eq.s32.totalorder %v554, %v271
        %vm563 = vcmp.eq.s32.totalorder %v555, %v271
        %v564 = vperm.slane %v540, 0
        %v565 = vperm.slane %v541, 0
        %v566 = vperm.slane %v542, 0
        %v567 = vperm.slane %v543, 0
        %v568 = vperm.slane %v544, 0
        %v569 = vperm.slane %v545, 0
        %v570 = vperm.slane %v546, 0
        %v571 = vperm.slane %v547, 0
        %v572 = vsel %vm556, %v564, 0.0
        %v573 = vsel %vm557, %v565, 0.0
        %v574 = vsel %vm558, %v566, 0.0
        %v575 = vsel %vm559, %v567, 0.0
        %v576 = vsel %vm560, %v568, 0.0
        %v577 = vsel %vm561, %v569, 0.0
        %v578 = vsel %vm562, %v570, 0.0
        %v579 = vsel %vm563, %v571, 0.0
        %v580 = vadd.f32 %v477, %v572
        %v581 = vadd.f32 %v478, %v573
        %v582 = vadd.f32 %v479, %v574
        %v583 = vadd.f32 %v480, %v575
        %v584 = vadd.f32 %v481, %v576
        %v585 = vadd.f32 %v482, %v577
        %v586 = vadd.f32 %v483, %v578
        %v587 = vadd.f32 %v484, %v579
        %s588 = sadd.s32 %s269, 3072
        %v589 = vstv %s588
        %v590 = vadd.s32 %v589, %v273
        %v591 = vadd.s32 %v589, %v274
        %v592 = vadd.s32 %v589, %v275
        %v593 = vadd.s32 %v589, %v276
        %v594 = vadd.s32 %v589, %v277
        %v595 = vadd.s32 %v589, %v278
        %v596 = vadd.s32 %v589, %v279
        %v597 = vadd.s32 %v589, %v280
        %vm598 = vcmp.lt.s32.totalorder %v590, 25093
        %vm599 = vcmp.lt.s32.totalorder %v591, 25093
        %vm600 = vcmp.lt.s32.totalorder %v592, 25093
        %vm601 = vcmp.lt.s32.totalorder %v593, 25093
        %vm602 = vcmp.lt.s32.totalorder %v594, 25093
        %vm603 = vcmp.lt.s32.totalorder %v595, 25093
        %vm604 = vcmp.lt.s32.totalorder %v596, 25093
        %vm605 = vcmp.lt.s32.totalorder %v597, 25093
        %s606 = scalar_lea.vmem %s207, 24 [#allocation2]
        %v607 = vld [vmem:[%s606] sm:$0xff]
        %v608 = vperm.slane %v607, 0
        %v609 = vperm.slane %v607, 1
        %v610 = vperm.slane %v607, 2
        %v611 = vperm.slane %v607, 3
        %v612 = vperm.slane %v607, 4
        %v613 = vperm.slane %v607, 5
        %v614 = vperm.slane %v607, 6
        %v615 = vperm.slane %v607, 7
        %v616 = vsel %vm598, %v608, 4294967295
        %v617 = vsel %vm599, %v609, 4294967295
        %v618 = vsel %vm600, %v610, 4294967295
        %v619 = vsel %vm601, %v611, 4294967295
        %v620 = vsel %vm602, %v612, 4294967295
        %v621 = vsel %vm603, %v613, 4294967295
        %v622 = vsel %vm604, %v614, 4294967295
        %v623 = vsel %vm605, %v615, 4294967295
        %s624 = scalar_lea.vmem %s217, 24 [#allocation5]
        %v625 = vld [vmem:[%s624] sm:$0xff]
        %v627 = vperm.slane %v625, 0
        %v628 = vperm.slane %v625, 1
        %v629 = vperm.slane %v625, 2
        %v630 = vperm.slane %v625, 3
        %v631 = vperm.slane %v625, 4
        %v632 = vperm.slane %v625, 5
        %v633 = vperm.slane %v625, 6
        %v634 = vperm.slane %v625, 7
        %v643 = vsel %vm598, %v627, 0.0
        %v644 = vsel %vm599, %v628, 0.0
        %v645 = vsel %vm600, %v629, 0.0
        %v646 = vsel %vm601, %v630, 0.0
        %v647 = vsel %vm602, %v631, 0.0
        %v648 = vsel %vm603, %v632, 0.0
        %v649 = vsel %vm604, %v633, 0.0
        %v650 = vsel %vm605, %v634, 0.0
        %v651 = vperm.slane %v616, 0
        %v652 = vperm.slane %v617, 0
        %v653 = vperm.slane %v618, 0
        %v654 = vperm.slane %v619, 0
        %v655 = vperm.slane %v620, 0
        %v656 = vperm.slane %v621, 0
        %v657 = vperm.slane %v622, 0
        %v658 = vperm.slane %v623, 0
        %vm659 = vcmp.eq.s32.totalorder %v651, %v271
        %vm660 = vcmp.eq.s32.totalorder %v652, %v271
        %vm661 = vcmp.eq.s32.totalorder %v653, %v271
        %vm662 = vcmp.eq.s32.totalorder %v654, %v271
        %vm663 = vcmp.eq.s32.totalorder %v655, %v271
        %vm664 = vcmp.eq.s32.totalorder %v656, %v271
        %vm665 = vcmp.eq.s32.totalorder %v657, %v271
        %vm666 = vcmp.eq.s32.totalorder %v658, %v271
        %v667 = vperm.slane %v643, 0
        %v668 = vperm.slane %v644, 0
        %v669 = vperm.slane %v645, 0
        %v670 = vperm.slane %v646, 0
        %v671 = vperm.slane %v647, 0
        %v672 = vperm.slane %v648, 0
        %v673 = vperm.slane %v649, 0
        %v674 = vperm.slane %v650, 0
        %v675 = vsel %vm659, %v667, 0.0
        %v676 = vsel %vm660, %v668, 0.0
        %v677 = vsel %vm661, %v669, 0.0
        %v678 = vsel %vm662, %v670, 0.0
        %v679 = vsel %vm663, %v671, 0.0
        %v680 = vsel %vm664, %v672, 0.0
        %v681 = vsel %vm665, %v673, 0.0
        %v682 = vsel %vm666, %v674, 0.0
        %v683 = vadd.f32 %v580, %v675
        %v684 = vadd.f32 %v581, %v676
        %v685 = vadd.f32 %v582, %v677
        %v686 = vadd.f32 %v583, %v678
        %v687 = vadd.f32 %v584, %v679
        %v688 = vadd.f32 %v585, %v680
        %v689 = vadd.f32 %v586, %v681
        %v690 = vadd.f32 %v587, %v682
        %s691 = sadd.s32 %s269, 4096
        %v692 = vstv %s691
        %v693 = vadd.s32 %v692, %v273
        %v694 = vadd.s32 %v692, %v274
        %v695 = vadd.s32 %v692, %v275
        %v696 = vadd.s32 %v692, %v276
        %v697 = vadd.s32 %v692, %v277
        %v698 = vadd.s32 %v692, %v278
        %v699 = vadd.s32 %v692, %v279
        %v700 = vadd.s32 %v692, %v280
        %vm701 = vcmp.lt.s32.totalorder %v693, 25093
        %vm702 = vcmp.lt.s32.totalorder %v694, 25093
        %vm703 = vcmp.lt.s32.totalorder %v695, 25093
        %vm704 = vcmp.lt.s32.totalorder %v696, 25093
        %vm705 = vcmp.lt.s32.totalorder %v697, 25093
        %vm706 = vcmp.lt.s32.totalorder %v698, 25093
        %vm707 = vcmp.lt.s32.totalorder %v699, 25093
        %vm708 = vcmp.lt.s32.totalorder %v700, 25093
        %s709 = scalar_lea.vmem %s207, 32 [#allocation2]
        %v710 = vld [vmem:[%s709] sm:$0xff]
        %v711 = vperm.slane %v710, 0
        %v712 = vperm.slane %v710, 1
        %v713 = vperm.slane %v710, 2
        %v714 = vperm.slane %v710, 3
        %v715 = vperm.slane %v710, 4
        %v716 = vperm.slane %v710, 5
        %v717 = vperm.slane %v710, 6
        %v718 = vperm.slane %v710, 7
        %v719 = vsel %vm701, %v711, 4294967295
        %v720 = vsel %vm702, %v712, 4294967295
        %v721 = vsel %vm703, %v713, 4294967295
        %v722 = vsel %vm704, %v714, 4294967295
        %v723 = vsel %vm705, %v715, 4294967295
        %v724 = vsel %vm706, %v716, 4294967295
        %v725 = vsel %vm707, %v717, 4294967295
        %v726 = vsel %vm708, %v718, 4294967295
        %s727 = scalar_lea.vmem %s217, 32 [#allocation5]
        %v728 = vld [vmem:[%s727] sm:$0xff]
        %v730 = vperm.slane %v728, 0
        %v731 = vperm.slane %v728, 1
        %v732 = vperm.slane %v728, 2
        %v733 = vperm.slane %v728, 3
        %v734 = vperm.slane %v728, 4
        %v735 = vperm.slane %v728, 5
        %v736 = vperm.slane %v728, 6
        %v737 = vperm.slane %v728, 7
        %v746 = vsel %vm701, %v730, 0.0
        %v747 = vsel %vm702, %v731, 0.0
        %v748 = vsel %vm703, %v732, 0.0
        %v749 = vsel %vm704, %v733, 0.0
        %v750 = vsel %vm705, %v734, 0.0
        %v751 = vsel %vm706, %v735, 0.0
        %v752 = vsel %vm707, %v736, 0.0
        %v753 = vsel %vm708, %v737, 0.0
        %v754 = vperm.slane %v719, 0
        %v755 = vperm.slane %v720, 0
        %v756 = vperm.slane %v721, 0
        %v757 = vperm.slane %v722, 0
        %v758 = vperm.slane %v723, 0
        %v759 = vperm.slane %v724, 0
        %v760 = vperm.slane %v725, 0
        %v761 = vperm.slane %v726, 0
        %vm762 = vcmp.eq.s32.totalorder %v754, %v271
        %vm763 = vcmp.eq.s32.totalorder %v755, %v271
        %vm764 = vcmp.eq.s32.totalorder %v756, %v271
        %vm765 = vcmp.eq.s32.totalorder %v757, %v271
        %vm766 = vcmp.eq.s32.totalorder %v758, %v271
        %vm767 = vcmp.eq.s32.totalorder %v759, %v271
        %vm768 = vcmp.eq.s32.totalorder %v760, %v271
        %vm769 = vcmp.eq.s32.totalorder %v761, %v271
        %v770 = vperm.slane %v746, 0
        %v771 = vperm.slane %v747, 0
        %v772 = vperm.slane %v748, 0
        %v773 = vperm.slane %v749, 0
        %v774 = vperm.slane %v750, 0
        %v775 = vperm.slane %v751, 0
        %v776 = vperm.slane %v752, 0
        %v777 = vperm.slane %v753, 0
        %v778 = vsel %vm762, %v770, 0.0
        %v779 = vsel %vm763, %v771, 0.0
        %v780 = vsel %vm764, %v772, 0.0
        %v781 = vsel %vm765, %v773, 0.0
        %v782 = vsel %vm766, %v774, 0.0
        %v783 = vsel %vm767, %v775, 0.0
        %v784 = vsel %vm768, %v776, 0.0
        %v785 = vsel %vm769, %v777, 0.0
        %v786 = vadd.f32 %v683, %v778
        %v787 = vadd.f32 %v684, %v779
        %v788 = vadd.f32 %v685, %v780
        %v789 = vadd.f32 %v686, %v781
        %v790 = vadd.f32 %v687, %v782
        %v791 = vadd.f32 %v688, %v783
        %v792 = vadd.f32 %v689, %v784
        %v793 = vadd.f32 %v690, %v785
        %s794 = sadd.s32 %s269, 5120
        %v795 = vstv %s794
        %v796 = vadd.s32 %v795, %v273
        %v797 = vadd.s32 %v795, %v274
        %v798 = vadd.s32 %v795, %v275
        %v799 = vadd.s32 %v795, %v276
        %v800 = vadd.s32 %v795, %v277
        %v801 = vadd.s32 %v795, %v278
        %v802 = vadd.s32 %v795, %v279
        %v803 = vadd.s32 %v795, %v280
        %vm804 = vcmp.lt.s32.totalorder %v796, 25093
        %vm805 = vcmp.lt.s32.totalorder %v797, 25093
        %vm806 = vcmp.lt.s32.totalorder %v798, 25093
        %vm807 = vcmp.lt.s32.totalorder %v799, 25093
        %vm808 = vcmp.lt.s32.totalorder %v800, 25093
        %vm809 = vcmp.lt.s32.totalorder %v801, 25093
        %vm810 = vcmp.lt.s32.totalorder %v802, 25093
        %vm811 = vcmp.lt.s32.totalorder %v803, 25093
        %s812 = scalar_lea.vmem %s207, 40 [#allocation2]
        %v813 = vld [vmem:[%s812] sm:$0xff]
        %v814 = vperm.slane %v813, 0
        %v815 = vperm.slane %v813, 1
        %v816 = vperm.slane %v813, 2
        %v817 = vperm.slane %v813, 3
        %v818 = vperm.slane %v813, 4
        %v819 = vperm.slane %v813, 5
        %v820 = vperm.slane %v813, 6
        %v821 = vperm.slane %v813, 7
        %v822 = vsel %vm804, %v814, 4294967295
        %v823 = vsel %vm805, %v815, 4294967295
        %v824 = vsel %vm806, %v816, 4294967295
        %v825 = vsel %vm807, %v817, 4294967295
        %v826 = vsel %vm808, %v818, 4294967295
        %v827 = vsel %vm809, %v819, 4294967295
        %v828 = vsel %vm810, %v820, 4294967295
        %v829 = vsel %vm811, %v821, 4294967295
        %s830 = scalar_lea.vmem %s217, 40 [#allocation5]
        %v831 = vld [vmem:[%s830] sm:$0xff]
        %v833 = vperm.slane %v831, 0
        %v834 = vperm.slane %v831, 1
        %v835 = vperm.slane %v831, 2
        %v836 = vperm.slane %v831, 3
        %v837 = vperm.slane %v831, 4
        %v838 = vperm.slane %v831, 5
        %v839 = vperm.slane %v831, 6
        %v840 = vperm.slane %v831, 7
        %v849 = vsel %vm804, %v833, 0.0
        %v850 = vsel %vm805, %v834, 0.0
        %v851 = vsel %vm806, %v835, 0.0
        %v852 = vsel %vm807, %v836, 0.0
        %v853 = vsel %vm808, %v837, 0.0
        %v854 = vsel %vm809, %v838, 0.0
        %v855 = vsel %vm810, %v839, 0.0
        %v856 = vsel %vm811, %v840, 0.0
        %v857 = vperm.slane %v822, 0
        %v858 = vperm.slane %v823, 0
        %v859 = vperm.slane %v824, 0
        %v860 = vperm.slane %v825, 0
        %v861 = vperm.slane %v826, 0
        %v862 = vperm.slane %v827, 0
        %v863 = vperm.slane %v828, 0
        %v864 = vperm.slane %v829, 0
        %vm865 = vcmp.eq.s32.totalorder %v857, %v271
        %vm866 = vcmp.eq.s32.totalorder %v858, %v271
        %vm867 = vcmp.eq.s32.totalorder %v859, %v271
        %vm868 = vcmp.eq.s32.totalorder %v860, %v271
        %vm869 = vcmp.eq.s32.totalorder %v861, %v271
        %vm870 = vcmp.eq.s32.totalorder %v862, %v271
        %vm871 = vcmp.eq.s32.totalorder %v863, %v271
        %vm872 = vcmp.eq.s32.totalorder %v864, %v271
        %v873 = vperm.slane %v849, 0
        %v874 = vperm.slane %v850, 0
        %v875 = vperm.slane %v851, 0
        %v876 = vperm.slane %v852, 0
        %v877 = vperm.slane %v853, 0
        %v878 = vperm.slane %v854, 0
        %v879 = vperm.slane %v855, 0
        %v880 = vperm.slane %v856, 0
        %v881 = vsel %vm865, %v873, 0.0
        %v882 = vsel %vm866, %v874, 0.0
        %v883 = vsel %vm867, %v875, 0.0
        %v884 = vsel %vm868, %v876, 0.0
        %v885 = vsel %vm869, %v877, 0.0
        %v886 = vsel %vm870, %v878, 0.0
        %v887 = vsel %vm871, %v879, 0.0
        %v888 = vsel %vm872, %v880, 0.0
        %v889 = vadd.f32 %v786, %v881
        %v890 = vadd.f32 %v787, %v882
        %v891 = vadd.f32 %v788, %v883
        %v892 = vadd.f32 %v789, %v884
        %v893 = vadd.f32 %v790, %v885
        %v894 = vadd.f32 %v791, %v886
        %v895 = vadd.f32 %v792, %v887
        %v896 = vadd.f32 %v793, %v888
        %s897 = sadd.s32 %s269, 6144
        %v898 = vstv %s897
        %v899 = vadd.s32 %v898, %v273
        %v900 = vadd.s32 %v898, %v274
        %v901 = vadd.s32 %v898, %v275
        %v902 = vadd.s32 %v898, %v276
        %v903 = vadd.s32 %v898, %v277
        %v904 = vadd.s32 %v898, %v278
        %v905 = vadd.s32 %v898, %v279
        %v906 = vadd.s32 %v898, %v280
        %vm907 = vcmp.lt.s32.totalorder %v899, 25093
        %vm908 = vcmp.lt.s32.totalorder %v900, 25093
        %vm909 = vcmp.lt.s32.totalorder %v901, 25093
        %vm910 = vcmp.lt.s32.totalorder %v902, 25093
        %vm911 = vcmp.lt.s32.totalorder %v903, 25093
        %vm912 = vcmp.lt.s32.totalorder %v904, 25093
        %vm913 = vcmp.lt.s32.totalorder %v905, 25093
        %vm914 = vcmp.lt.s32.totalorder %v906, 25093
        %s915 = scalar_lea.vmem %s207, 48 [#allocation2]
        %v916 = vld [vmem:[%s915] sm:$0xff]
        %v917 = vperm.slane %v916, 0
        %v918 = vperm.slane %v916, 1
        %v919 = vperm.slane %v916, 2
        %v920 = vperm.slane %v916, 3
        %v921 = vperm.slane %v916, 4
        %v922 = vperm.slane %v916, 5
        %v923 = vperm.slane %v916, 6
        %v924 = vperm.slane %v916, 7
        %v925 = vsel %vm907, %v917, 4294967295
        %v926 = vsel %vm908, %v918, 4294967295
        %v927 = vsel %vm909, %v919, 4294967295
        %v928 = vsel %vm910, %v920, 4294967295
        %v929 = vsel %vm911, %v921, 4294967295
        %v930 = vsel %vm912, %v922, 4294967295
        %v931 = vsel %vm913, %v923, 4294967295
        %v932 = vsel %vm914, %v924, 4294967295
        %s933 = scalar_lea.vmem %s217, 48 [#allocation5]
        %v934 = vld [vmem:[%s933] sm:$0xff]
        %v936 = vperm.slane %v934, 0
        %v937 = vperm.slane %v934, 1
        %v938 = vperm.slane %v934, 2
        %v939 = vperm.slane %v934, 3
        %v940 = vperm.slane %v934, 4
        %v941 = vperm.slane %v934, 5
        %v942 = vperm.slane %v934, 6
        %v943 = vperm.slane %v934, 7
        %v952 = vsel %vm907, %v936, 0.0
        %v953 = vsel %vm908, %v937, 0.0
        %v954 = vsel %vm909, %v938, 0.0
        %v955 = vsel %vm910, %v939, 0.0
        %v956 = vsel %vm911, %v940, 0.0
        %v957 = vsel %vm912, %v941, 0.0
        %v958 = vsel %vm913, %v942, 0.0
        %v959 = vsel %vm914, %v943, 0.0
        %v960 = vperm.slane %v925, 0
        %v961 = vperm.slane %v926, 0
        %v962 = vperm.slane %v927, 0
        %v963 = vperm.slane %v928, 0
        %v964 = vperm.slane %v929, 0
        %v965 = vperm.slane %v930, 0
        %v966 = vperm.slane %v931, 0
        %v967 = vperm.slane %v932, 0
        %vm968 = vcmp.eq.s32.totalorder %v960, %v271
        %vm969 = vcmp.eq.s32.totalorder %v961, %v271
        %vm970 = vcmp.eq.s32.totalorder %v962, %v271
        %vm971 = vcmp.eq.s32.totalorder %v963, %v271
        %vm972 = vcmp.eq.s32.totalorder %v964, %v271
        %vm973 = vcmp.eq.s32.totalorder %v965, %v271
        %vm974 = vcmp.eq.s32.totalorder %v966, %v271
        %vm975 = vcmp.eq.s32.totalorder %v967, %v271
        %v976 = vperm.slane %v952, 0
        %v977 = vperm.slane %v953, 0
        %v978 = vperm.slane %v954, 0
        %v979 = vperm.slane %v955, 0
        %v980 = vperm.slane %v956, 0
        %v981 = vperm.slane %v957, 0
        %v982 = vperm.slane %v958, 0
        %v983 = vperm.slane %v959, 0
        %v984 = vsel %vm968, %v976, 0.0
        %v985 = vsel %vm969, %v977, 0.0
        %v986 = vsel %vm970, %v978, 0.0
        %v987 = vsel %vm971, %v979, 0.0
        %v988 = vsel %vm972, %v980, 0.0
        %v989 = vsel %vm973, %v981, 0.0
        %v990 = vsel %vm974, %v982, 0.0
        %v991 = vsel %vm975, %v983, 0.0
        %v992 = vadd.f32 %v889, %v984
        %v993 = vadd.f32 %v890, %v985
        %v994 = vadd.f32 %v891, %v986
        %v995 = vadd.f32 %v892, %v987
        %v996 = vadd.f32 %v893, %v988
        %v997 = vadd.f32 %v894, %v989
        %v998 = vadd.f32 %v895, %v990
        %v999 = vadd.f32 %v896, %v991
        %s1000 = sadd.s32 %s269, 7168
        %v1001 = vstv %s1000
        %v1002 = vadd.s32 %v1001, %v273
        %v1003 = vadd.s32 %v1001, %v274
        %v1004 = vadd.s32 %v1001, %v275
        %v1005 = vadd.s32 %v1001, %v276
        %v1006 = vadd.s32 %v1001, %v277
        %v1007 = vadd.s32 %v1001, %v278
        %v1008 = vadd.s32 %v1001, %v279
        %v1009 = vadd.s32 %v1001, %v280
        %vm1010 = vcmp.lt.s32.totalorder %v1002, 25093
        %vm1011 = vcmp.lt.s32.totalorder %v1003, 25093
        %vm1012 = vcmp.lt.s32.totalorder %v1004, 25093
        %vm1013 = vcmp.lt.s32.totalorder %v1005, 25093
        %vm1014 = vcmp.lt.s32.totalorder %v1006, 25093
        %vm1015 = vcmp.lt.s32.totalorder %v1007, 25093
        %vm1016 = vcmp.lt.s32.totalorder %v1008, 25093
        %vm1017 = vcmp.lt.s32.totalorder %v1009, 25093
        %s1018 = scalar_lea.vmem %s207, 56 [#allocation2]
        %v1019 = vld [vmem:[%s1018] sm:$0xff]
        %v1020 = vperm.slane %v1019, 0
        %v1021 = vperm.slane %v1019, 1
        %v1022 = vperm.slane %v1019, 2
        %v1023 = vperm.slane %v1019, 3
        %v1024 = vperm.slane %v1019, 4
        %v1025 = vperm.slane %v1019, 5
        %v1026 = vperm.slane %v1019, 6
        %v1027 = vperm.slane %v1019, 7
        %v1028 = vsel %vm1010, %v1020, 4294967295
        %v1029 = vsel %vm1011, %v1021, 4294967295
        %v1030 = vsel %vm1012, %v1022, 4294967295
        %v1031 = vsel %vm1013, %v1023, 4294967295
        %v1032 = vsel %vm1014, %v1024, 4294967295
        %v1033 = vsel %vm1015, %v1025, 4294967295
        %v1034 = vsel %vm1016, %v1026, 4294967295
        %v1035 = vsel %vm1017, %v1027, 4294967295
        %s1036 = scalar_lea.vmem %s217, 56 [#allocation5]
        %v1037 = vld [vmem:[%s1036] sm:$0xff]
        %v1039 = vperm.slane %v1037, 0
        %v1040 = vperm.slane %v1037, 1
        %v1041 = vperm.slane %v1037, 2
        %v1042 = vperm.slane %v1037, 3
        %v1043 = vperm.slane %v1037, 4
        %v1044 = vperm.slane %v1037, 5
        %v1045 = vperm.slane %v1037, 6
        %v1046 = vperm.slane %v1037, 7
        %v1055 = vsel %vm1010, %v1039, 0.0
        %v1056 = vsel %vm1011, %v1040, 0.0
        %v1057 = vsel %vm1012, %v1041, 0.0
        %v1058 = vsel %vm1013, %v1042, 0.0
        %v1059 = vsel %vm1014, %v1043, 0.0
        %v1060 = vsel %vm1015, %v1044, 0.0
        %v1061 = vsel %vm1016, %v1045, 0.0
        %v1062 = vsel %vm1017, %v1046, 0.0
        %v1063 = vperm.slane %v1028, 0
        %v1064 = vperm.slane %v1029, 0
        %v1065 = vperm.slane %v1030, 0
        %v1066 = vperm.slane %v1031, 0
        %v1067 = vperm.slane %v1032, 0
        %v1068 = vperm.slane %v1033, 0
        %v1069 = vperm.slane %v1034, 0
        %v1070 = vperm.slane %v1035, 0
        %vm1071 = vcmp.eq.s32.totalorder %v1063, %v271
        %vm1072 = vcmp.eq.s32.totalorder %v1064, %v271
        %vm1073 = vcmp.eq.s32.totalorder %v1065, %v271
        %vm1074 = vcmp.eq.s32.totalorder %v1066, %v271
        %vm1075 = vcmp.eq.s32.totalorder %v1067, %v271
        %vm1076 = vcmp.eq.s32.totalorder %v1068, %v271
        %vm1077 = vcmp.eq.s32.totalorder %v1069, %v271
        %vm1078 = vcmp.eq.s32.totalorder %v1070, %v271
        %v1079 = vperm.slane %v1055, 0
        %v1080 = vperm.slane %v1056, 0
        %v1081 = vperm.slane %v1057, 0
        %v1082 = vperm.slane %v1058, 0
        %v1083 = vperm.slane %v1059, 0
        %v1084 = vperm.slane %v1060, 0
        %v1085 = vperm.slane %v1061, 0
        %v1086 = vperm.slane %v1062, 0
        %v1087 = vsel %vm1071, %v1079, 0.0
        %v1088 = vsel %vm1072, %v1080, 0.0
        %v1089 = vsel %vm1073, %v1081, 0.0
        %v1090 = vsel %vm1074, %v1082, 0.0
        %v1091 = vsel %vm1075, %v1083, 0.0
        %v1092 = vsel %vm1076, %v1084, 0.0
        %v1093 = vsel %vm1077, %v1085, 0.0
        %v1094 = vsel %vm1078, %v1086, 0.0
        %v1095 = vadd.f32 %v992, %v1087
        %v1096 = vadd.f32 %v993, %v1088
        %v1097 = vadd.f32 %v994, %v1089
        %v1098 = vadd.f32 %v995, %v1090
        %v1099 = vadd.f32 %v996, %v1091
        %v1100 = vadd.f32 %v997, %v1092
        %v1101 = vadd.f32 %v998, %v1093
        %v1102 = vadd.f32 %v999, %v1094
        %v1103 = vld [vmem:[#allocation7] sm:$0xff]
        %v1104 = vld [vmem:[#allocation7 + $0x8] sm:$0xff]
        %v1105 = vld [vmem:[#allocation7 + $0x10] sm:$0xff]
        %v1106 = vld [vmem:[#allocation7 + $0x18] sm:$0xff]
        %v1107 = vld [vmem:[#allocation7 + $0x20] sm:$0xff]
        %v1108 = vld [vmem:[#allocation7 + $0x28] sm:$0xff]
        %v1109 = vld [vmem:[#allocation7 + $0x30] sm:$0xff]
        %v1110 = vld [vmem:[#allocation7 + $0x38] sm:$0xff]
        %v1111 = vadd.f32 %v1103, %v1095
        %v1112 = vadd.f32 %v1104, %v1096
        %v1113 = vadd.f32 %v1105, %v1097
        %v1114 = vadd.f32 %v1106, %v1098
        %v1115 = vadd.f32 %v1107, %v1099
        %v1116 = vadd.f32 %v1108, %v1100
        %v1117 = vadd.f32 %v1109, %v1101
        %v1118 = vadd.f32 %v1110, %v1102
        %1119 = vst [vmem:[#allocation7] sm:$0xff] %v1111
        %1120 = vst [vmem:[#allocation7 + $0x8] sm:$0xff] %v1112
        %1121 = vst [vmem:[#allocation7 + $0x10] sm:$0xff] %v1113
        %1122 = vst [vmem:[#allocation7 + $0x18] sm:$0xff] %v1114
        %1123 = vst [vmem:[#allocation7 + $0x20] sm:$0xff] %v1115
        %1124 = vst [vmem:[#allocation7 + $0x28] sm:$0xff] %v1116
        %1125 = vst [vmem:[#allocation7 + $0x30] sm:$0xff] %v1117
        %1126 = vst [vmem:[#allocation7 + $0x38] sm:$0xff] %v1118
        // Predicated region
        $region41: #{tpu_custom_call.1} parent=27 // pred_check
          %p1127 = pneg %p118
        $region42: #{tpu_custom_call.1} parent=27 // pred_check_branch
          %1129 = sbr.rel (%p1127) target = $region44
        $region43: #{tpu_custom_call.1} parent=27 // pred_region
          %1131 = vsyncadd [#allocation4], 0
          %s1132 = smul.addr %s24, 8
          %s1133 = smul.addr %s1132, 8
          %s1134 = scalar_lea.hbm %s2, %s1133
          %s1136 = sshll.u32 [#allocation7], 4
          %s1137 = int_to_ptr.vmem [resolvable:$true] %s1136
          %s1138 = sshll.u32 %s1134, 4
          %s1139 = int_to_ptr.hbm [resolvable:$true] %s1138
          %1141 = dma.vmem_to_hbm [thread:$0]  %s1137, 1024, %s1139, [#allocation4]
        $region44: #{tpu_custom_call.1} parent=27 // pred_fallthru
          _
        // Predicated region
        $region45: #{tpu_custom_call.1} parent=27 // pred_check
          %p1142 = pneg %p118
        $region46: #{tpu_custom_call.1} parent=27 // pred_check_branch
          %1144 = sbr.rel (%p1142) target = $region48
        $region47: #{tpu_custom_call.1} parent=27 // pred_region
          %1146 = dma.done [#allocation4], 1024
        $region48: #{tpu_custom_call.1} parent=27 // pred_fallthru
          _
      $region28: #{tpu_custom_call.1} parent=5 // pred_fallthru
        _
      %p1147 = scmp.le.s32.totalorder 2, %s15
      // Predicated region
      $region49: #{tpu_custom_call.1} parent=5 // pred_check
        %p1148 = pneg %p1147
      $region50: #{tpu_custom_call.1} parent=5 // pred_check_branch
        %1150 = sbr.rel (%p1148) target = $region52
      $region51: #{tpu_custom_call.1} parent=5 // pred_region
        %s1151 = ssub.s32 %s15, 2
      $region52: #{tpu_custom_call.1} parent=5 // pred_fallthru
        _
    $region6: #{tpu_custom_call.1} parent=1 // loop_footer
      %s19 = sadd.s32 1, %s15
    $region7: #{tpu_custom_call.1} parent=1 // loop_footer_branch
      %14 = sbr.rel target = $region3
    $region8: #{tpu_custom_call.1} parent=1 // loop_exit
      _
    %1152 = vsyncpa [#allocation3], 1
    %s1153 = scalar_lea.sflag [#allocation3], 1
    %1154 = vsyncpa %s1153, 1
    %1155 = vsyncpa [#allocation6], 1
    %s1156 = scalar_lea.sflag [#allocation6], 1
    %1157 = vsyncpa %s1156, 1
    %1158 = vsyncpa [#allocation4], 1
    %s1159 = scalar_lea.sflag [#allocation4], 1
    %1160 = vsyncpa %s1159, 1

</llo_original>
